<compile_context>
chip_gen: v7x
topology: tpu7x:2x2x1
jax: 0.10.0
libtpu: 0.0.40
codegen_flags: <defaults>
</compile_context>

<pallas_src>
import jax
import jax.numpy as jnp
from jax.experimental import pallas as pl
from jax.experimental.pallas import tpu as pltpu

_OUT_PAD = 8  # padded output width (true out_dim=3; extra columns are zero, sliced in wrapper)


def _mlp_kernel(x1_ref, x2_ref, x3_ref,
                w1a_ref, w1b_ref, w1c_ref, b1_ref,
                w2_ref, b2_ref,
                w3_ref, b3_ref,
                w4_ref, b4_ref,
                o_ref):
    cdt = w2_ref.dtype  # matmul-input (compute) dtype; accumulation is always f32

    # Activations arrive as f32 from HBM; cast to compute dtype on the VPU here
    # (removes the wrapper-side cast pass over HBM).
    x1 = x1_ref[...].astype(cdt)
    x2 = x2_ref[...].astype(cdt)
    x3 = x3_ref[...].astype(cdt)

    # Layer 1: fused concat -> sum of matmuls against row-slices of W1.
    h = (jnp.dot(x1, w1a_ref[...], preferred_element_type=jnp.float32)
         + jnp.dot(x2, w1b_ref[...], preferred_element_type=jnp.float32)
         + jnp.dot(x3, w1c_ref[...], preferred_element_type=jnp.float32))
    h = jnp.maximum(h + b1_ref[...], 0.0)                       # f32 bias + ReLU

    # Layer 2
    h = jnp.dot(h.astype(cdt), w2_ref[...], preferred_element_type=jnp.float32)
    h = jnp.maximum(h + b2_ref[...], 0.0)

    # Layer 3
    h = jnp.dot(h.astype(cdt), w3_ref[...], preferred_element_type=jnp.float32)
    h = jnp.maximum(h + b3_ref[...], 0.0)

    # Layer 4: narrow (zero-padded to 8 columns) f32 output tile.
    out = jnp.dot(h.astype(cdt), w4_ref[...], preferred_element_type=jnp.float32)
    o_ref[...] = out + b4_ref[...]                               # [TB, 8] f32


def _round_up(x, m):
    return (x + m - 1) // m * m


def _choose_tb(B, block_b):
    """Batch tile: multiple of 16; >=2 grid steps when B >= 32 (v7x has 2 TCs);
    capped at block_b (default 1024, a multiple of 512 for v6e/v7x)."""
    if B < 32:
        return _round_up(max(B, 1), 16)
    return max(16, min(block_b, _round_up(pl.cdiv(B, 2), 16)))


def prepare_params(params, feat_splits, *, compute_dtype=jnp.bfloat16):
    """One-time parameter prep (hoisted out of the hot path):
    cast weights to the compute dtype, split W1 rows per input, zero-pad the
    last layer to _OUT_PAD columns, keep biases in f32."""
    (w1, b1), (w2, b2), (w3, b3), (w4, b4) = params
    f1, f2, f3 = feat_splits
    assert w1.shape[0] == f1 + f2 + f3
    out_dim = w4.shape[1]
    cdt = compute_dtype

    w4p = jnp.zeros((w4.shape[0], _OUT_PAD), cdt).at[:, :out_dim].set(w4.astype(cdt))
    b4p = jnp.zeros((1, _OUT_PAD), jnp.float32).at[:, :out_dim].set(
        jnp.asarray(b4, jnp.float32).reshape(1, -1))

    return {
        "w1a": w1[:f1].astype(cdt),
        "w1b": w1[f1:f1 + f2].astype(cdt),
        "w1c": w1[f1 + f2:].astype(cdt),
        "b1": jnp.asarray(b1, jnp.float32).reshape(1, -1),
        "w2": w2.astype(cdt),
        "b2": jnp.asarray(b2, jnp.float32).reshape(1, -1),
        "w3": w3.astype(cdt),
        "b3": jnp.asarray(b3, jnp.float32).reshape(1, -1),
        "w4": w4p,
        "b4": b4p,
        "out_dim": out_dim,
    }


def fc_forward(x1, x2, x3, prepped, *, block_b=1024):
    """Pallas implementation of FC.forward (the `self.linear` Sequential).

    `prepped` is the output of prepare_params(...)."""
    B = x1.shape[0]
    x1 = x1.reshape(B, -1)
    x2 = x2.reshape(B, -1)
    x3 = x3.reshape(B, -1)
    f1, f2, f3 = x1.shape[1], x2.shape[1], x3.shape[1]
    assert prepped["w1a"].shape[0] == f1
    assert prepped["w1b"].shape[0] == f2
    assert prepped["w1c"].shape[0] == f3

    tb = _choose_tb(B, block_b)
    bp = _round_up(B, tb)
    if bp != B:  # pad only the ragged trailing block case
        pad = bp - B
        x1 = jnp.pad(x1, ((0, pad), (0, 0)))
        x2 = jnp.pad(x2, ((0, pad), (0, 0)))
        x3 = jnp.pad(x3, ((0, pad), (0, 0)))

    x_spec = lambda f: pl.BlockSpec((tb, f), lambda i: (i, 0))
    const = lambda a: pl.BlockSpec(a.shape, lambda i: (0, 0))  # VMEM-resident constant

    out = pl.pallas_call(
        _mlp_kernel,
        out_shape=jax.ShapeDtypeStruct((bp, _OUT_PAD), jnp.float32),
        grid=(bp // tb,),
        in_specs=[
            x_spec(f1), x_spec(f2), x_spec(f3),
            const(prepped["w1a"]), const(prepped["w1b"]), const(prepped["w1c"]),
            const(prepped["b1"]),
            const(prepped["w2"]), const(prepped["b2"]),
            const(prepped["w3"]), const(prepped["b3"]),
            const(prepped["w4"]), const(prepped["b4"]),
        ],
        out_specs=pl.BlockSpec((tb, _OUT_PAD), lambda i: (i, 0)),
        compiler_params=pltpu.CompilerParams(
            dimension_semantics=("parallel",)),
    )(x1, x2, x3,
      prepped["w1a"], prepped["w1b"], prepped["w1c"], prepped["b1"],
      prepped["w2"], prepped["b2"],
      prepped["w3"], prepped["b3"],
      prepped["w4"], prepped["b4"])

    return out[:B, :prepped["out_dim"]]


def init_params(key, in_dim=72):
    """Deterministic init mirroring nn.Linear shapes (weights stored as [in, out])."""
    dims = [(in_dim, 128), (128, 128), (128, 128), (128, 3)]
    params = []
    for fan_in, fan_out in dims:
        key, kw, kb = jax.random.split(key, 3)
        bound = 1.0 / jnp.sqrt(fan_in)
        w = jax.random.uniform(kw, (fan_in, fan_out), jnp.float32, -bound, bound)
        b = jax.random.uniform(kb, (1, fan_out), jnp.float32, -bound, bound)
        params.append((w, b))
    return params


def fc_forward_ref(x1, x2, x3, params):
    """Pure-JAX (f32) reference for correctness checking."""
    b = x1.shape[0]
    x = jnp.concatenate(
        [x1.reshape(b, -1), x2.reshape(b, -1), x3.reshape(b, -1)], axis=1
    ).astype(jnp.float32)
    (w1, b1), (w2, b2), (w3, b3), (w4, b4) = params
    h = jnp.maximum(x @ w1 + b1, 0.0)
    h = jnp.maximum(h @ w2 + b2, 0.0)
    h = jnp.maximum(h @ w3 + b3, 0.0)
    return h @ w4 + b4


if __name__ == "__main__":
    key = jax.random.PRNGKey(0)
    kp, k1, k2, k3 = jax.random.split(key, 4)

    params = init_params(kp, in_dim=72)

    # Small example inputs; flattened feature sizes sum to in_dim = 72.
    B = 2
    x1 = jax.random.normal(k1, (B, 24), jnp.float32)      # flatten -> 24
    x2 = jax.random.normal(k2, (B, 4, 6), jnp.float32)    # flatten -> 24
    x3 = jax.random.normal(k3, (B, 24), jnp.float32)      # flatten -> 24

    ref = fc_forward_ref(x1, x2, x3, params)
    feat_splits = (24, 24, 24)

    # f32 compute path: exactness check against the reference.
    pp_f32 = prepare_params(params, feat_splits, compute_dtype=jnp.float32)
    out_f32 = jax.block_until_ready(fc_forward(x1, x2, x3, pp_f32))
    assert out_f32.shape == (B, 3), out_f32.shape
    assert jnp.allclose(out_f32, ref, atol=1e-5, rtol=1e-5), (out_f32, ref)

    # Default bf16 matmul-input path (v6e/v7x-friendly): loose tolerance vs f32 ref.
    pp_bf16 = prepare_params(params, feat_splits)  # bf16 matmul inputs -> ~1e-2 error
    out = jax.block_until_ready(fc_forward(x1, x2, x3, pp_bf16))
    assert out.shape == (B, 3), out.shape
    assert jnp.allclose(out, ref, atol=3e-2, rtol=3e-2), (out, ref)

    print("KERNEL_OK")
</pallas_src>

<mosaic_0001>
module attributes {stable_mosaic.version = 11 : i64} {
  func.func @_mlp_kernel(%arg0: i32, %arg1: memref<16x24xf32, #tpu.memory_space<vmem>>, %arg2: memref<16x24xf32, #tpu.memory_space<vmem>>, %arg3: memref<16x24xf32, #tpu.memory_space<vmem>>, %arg4: memref<24x128xf32, #tpu.memory_space<vmem>>, %arg5: memref<24x128xf32, #tpu.memory_space<vmem>>, %arg6: memref<24x128xf32, #tpu.memory_space<vmem>>, %arg7: memref<1x128xf32, #tpu.memory_space<vmem>>, %arg8: memref<128x128xf32, #tpu.memory_space<vmem>>, %arg9: memref<1x128xf32, #tpu.memory_space<vmem>>, %arg10: memref<128x128xf32, #tpu.memory_space<vmem>>, %arg11: memref<1x128xf32, #tpu.memory_space<vmem>>, %arg12: memref<128x8xf32, #tpu.memory_space<vmem>>, %arg13: memref<1x8xf32, #tpu.memory_space<vmem>>, %arg14: memref<16x8xf32, #tpu.memory_space<vmem>>) attributes {dimension_semantics = [#tpu.dimension_semantics<parallel>], iteration_bounds = array<i64: 1>, scalar_prefetch = 0 : i64, scratch_operands = 0 : i64, tpu.core_type = #tpu.core_type<tc>, window_params = [{transform_indices = @transform_0, window_bounds = array<i64: 16, 24>}, {transform_indices = @transform_1, window_bounds = array<i64: 16, 24>}, {transform_indices = @transform_2, window_bounds = array<i64: 16, 24>}, {pipeline_mode = #tpu.pipeline_mode<synchronous>, transform_indices = @transform_3, window_bounds = array<i64: 24, 128>}, {pipeline_mode = #tpu.pipeline_mode<synchronous>, transform_indices = @transform_4, window_bounds = array<i64: 24, 128>}, {pipeline_mode = #tpu.pipeline_mode<synchronous>, transform_indices = @transform_5, window_bounds = array<i64: 24, 128>}, {pipeline_mode = #tpu.pipeline_mode<synchronous>, transform_indices = @transform_6, window_bounds = array<i64: 1, 128>}, {pipeline_mode = #tpu.pipeline_mode<synchronous>, transform_indices = @transform_7, window_bounds = array<i64: 128, 128>}, {pipeline_mode = #tpu.pipeline_mode<synchronous>, transform_indices = @transform_8, window_bounds = array<i64: 1, 128>}, {pipeline_mode = #tpu.pipeline_mode<synchronous>, transform_indices = @transform_9, window_bounds = array<i64: 128, 128>}, {pipeline_mode = #tpu.pipeline_mode<synchronous>, transform_indices = @transform_10, window_bounds = array<i64: 1, 128>}, {pipeline_mode = #tpu.pipeline_mode<synchronous>, transform_indices = @transform_11, window_bounds = array<i64: 128, 8>}, {pipeline_mode = #tpu.pipeline_mode<synchronous>, transform_indices = @transform_12, window_bounds = array<i64: 1, 8>}, {transform_indices = @transform_13, window_bounds = array<i64: 16, 8>}]} {
    %c0 = arith.constant 0 : index
    %c0_0 = arith.constant 0 : index
    %0 = vector.load %arg1[%c0, %c0_0] : memref<16x24xf32, #tpu.memory_space<vmem>>, vector<16x24xf32>
    %c0_1 = arith.constant 0 : index
    %c0_2 = arith.constant 0 : index
    %1 = vector.load %arg2[%c0_1, %c0_2] : memref<16x24xf32, #tpu.memory_space<vmem>>, vector<16x24xf32>
    %c0_3 = arith.constant 0 : index
    %c0_4 = arith.constant 0 : index
    %2 = vector.load %arg3[%c0_3, %c0_4] : memref<16x24xf32, #tpu.memory_space<vmem>>, vector<16x24xf32>
    %c0_5 = arith.constant 0 : index
    %c0_6 = arith.constant 0 : index
    %3 = vector.load %arg4[%c0_5, %c0_6] : memref<24x128xf32, #tpu.memory_space<vmem>>, vector<24x128xf32>
    %cst = arith.constant dense<0.000000e+00> : vector<16x128xf32>
    %4 = tpu.matmul %0, %3, %cst {dimension_numbers = #tpu.dot_dimension_numbers<[1], [0], [0], [1], [0, 0, 1, 1], [], []>} : vector<16x24xf32>, vector<24x128xf32>, vector<16x128xf32> -> vector<16x128xf32>
    %c0_7 = arith.constant 0 : index
    %c0_8 = arith.constant 0 : index
    %5 = vector.load %arg5[%c0_7, %c0_8] : memref<24x128xf32, #tpu.memory_space<vmem>>, vector<24x128xf32>
    %cst_9 = arith.constant dense<0.000000e+00> : vector<16x128xf32>
    %6 = tpu.matmul %1, %5, %cst_9 {dimension_numbers = #tpu.dot_dimension_numbers<[1], [0], [0], [1], [0, 0, 1, 1], [], []>} : vector<16x24xf32>, vector<24x128xf32>, vector<16x128xf32> -> vector<16x128xf32>
    %7 = arith.addf %4, %6 : vector<16x128xf32>
    %c0_10 = arith.constant 0 : index
    %c0_11 = arith.constant 0 : index
    %8 = vector.load %arg6[%c0_10, %c0_11] : memref<24x128xf32, #tpu.memory_space<vmem>>, vector<24x128xf32>
    %cst_12 = arith.constant dense<0.000000e+00> : vector<16x128xf32>
    %9 = tpu.matmul %2, %8, %cst_12 {dimension_numbers = #tpu.dot_dimension_numbers<[1], [0], [0], [1], [0, 0, 1, 1], [], []>} : vector<16x24xf32>, vector<24x128xf32>, vector<16x128xf32> -> vector<16x128xf32>
    %10 = arith.addf %7, %9 : vector<16x128xf32>
    %c0_13 = arith.constant 0 : index
    %c0_14 = arith.constant 0 : index
    %11 = vector.load %arg7[%c0_13, %c0_14] : memref<1x128xf32, #tpu.memory_space<vmem>>, vector<1x128xf32>
    %12 = vector.broadcast %11 : vector<1x128xf32> to vector<16x128xf32>
    %13 = arith.addf %10, %12 : vector<16x128xf32>
    %cst_15 = arith.constant 0.000000e+00 : f32
    %14 = vector.broadcast %cst_15 : f32 to vector<16x128xf32>
    %15 = arith.maximumf %13, %14 : vector<16x128xf32>
    %c0_16 = arith.constant 0 : index
    %c0_17 = arith.constant 0 : index
    %16 = vector.load %arg8[%c0_16, %c0_17] : memref<128x128xf32, #tpu.memory_space<vmem>>, vector<128x128xf32>
    %cst_18 = arith.constant dense<0.000000e+00> : vector<16x128xf32>
    %17 = tpu.matmul %15, %16, %cst_18 {dimension_numbers = #tpu.dot_dimension_numbers<[1], [0], [0], [1], [0, 0, 1, 1], [], []>} : vector<16x128xf32>, vector<128x128xf32>, vector<16x128xf32> -> vector<16x128xf32>
    %c0_19 = arith.constant 0 : index
    %c0_20 = arith.constant 0 : index
    %18 = vector.load %arg9[%c0_19, %c0_20] : memref<1x128xf32, #tpu.memory_space<vmem>>, vector<1x128xf32>
    %19 = vector.broadcast %18 : vector<1x128xf32> to vector<16x128xf32>
    %20 = arith.addf %17, %19 : vector<16x128xf32>
    %cst_21 = arith.constant 0.000000e+00 : f32
    %21 = vector.broadcast %cst_21 : f32 to vector<16x128xf32>
    %22 = arith.maximumf %20, %21 : vector<16x128xf32>
    %c0_22 = arith.constant 0 : index
    %c0_23 = arith.constant 0 : index
    %23 = vector.load %arg10[%c0_22, %c0_23] : memref<128x128xf32, #tpu.memory_space<vmem>>, vector<128x128xf32>
    %cst_24 = arith.constant dense<0.000000e+00> : vector<16x128xf32>
    %24 = tpu.matmul %22, %23, %cst_24 {dimension_numbers = #tpu.dot_dimension_numbers<[1], [0], [0], [1], [0, 0, 1, 1], [], []>} : vector<16x128xf32>, vector<128x128xf32>, vector<16x128xf32> -> vector<16x128xf32>
    %c0_25 = arith.constant 0 : index
    %c0_26 = arith.constant 0 : index
    %25 = vector.load %arg11[%c0_25, %c0_26] : memref<1x128xf32, #tpu.memory_space<vmem>>, vector<1x128xf32>
    %26 = vector.broadcast %25 : vector<1x128xf32> to vector<16x128xf32>
    %27 = arith.addf %24, %26 : vector<16x128xf32>
    %cst_27 = arith.constant 0.000000e+00 : f32
    %28 = vector.broadcast %cst_27 : f32 to vector<16x128xf32>
    %29 = arith.maximumf %27, %28 : vector<16x128xf32>
    %c0_28 = arith.constant 0 : index
    %c0_29 = arith.constant 0 : index
    %30 = vector.load %arg12[%c0_28, %c0_29] : memref<128x8xf32, #tpu.memory_space<vmem>>, vector<128x8xf32>
    %cst_30 = arith.constant dense<0.000000e+00> : vector<16x8xf32>
    %31 = tpu.matmul %29, %30, %cst_30 {dimension_numbers = #tpu.dot_dimension_numbers<[1], [0], [0], [1], [0, 0, 1, 1], [], []>} : vector<16x128xf32>, vector<128x8xf32>, vector<16x8xf32> -> vector<16x8xf32>
    %c0_31 = arith.constant 0 : index
    %c0_32 = arith.constant 0 : index
    %32 = vector.load %arg13[%c0_31, %c0_32] : memref<1x8xf32, #tpu.memory_space<vmem>>, vector<1x8xf32>
    %33 = vector.broadcast %32 : vector<1x8xf32> to vector<16x8xf32>
    %34 = arith.addf %31, %33 : vector<16x8xf32>
    %c0_33 = arith.constant 0 : index
    %c0_34 = arith.constant 0 : index
    %35 = vector.load %arg14[%c0_33, %c0_34] : memref<16x8xf32, #tpu.memory_space<vmem>>, vector<16x8xf32>
    tpu.vector_store %arg14[%c0_33, %c0_34], %34 {strides = array<i32>} : memref<16x8xf32, #tpu.memory_space<vmem>>, vector<16x8xf32>,
    return
  }
  func.func @transform_0(%arg0: i32) -> (i32, i32) {
    %c0_i32 = arith.constant 0 : i32
    %c0_i32_0 = arith.constant 0 : i32
    return %arg0, %c0_i32 : i32, i32
  }
  func.func @transform_1(%arg0: i32) -> (i32, i32) {
    %c0_i32 = arith.constant 0 : i32
    %c0_i32_0 = arith.constant 0 : i32
    return %arg0, %c0_i32 : i32, i32
  }
  func.func @transform_2(%arg0: i32) -> (i32, i32) {
    %c0_i32 = arith.constant 0 : i32
    %c0_i32_0 = arith.constant 0 : i32
    return %arg0, %c0_i32 : i32, i32
  }
  func.func @transform_3(%arg0: i32) -> (i32, i32) {
    %c0_i32 = arith.constant 0 : i32
    %c0_i32_0 = arith.constant 0 : i32
    %c0_i32_1 = arith.constant 0 : i32
    return %c0_i32, %c0_i32_0 : i32, i32
  }
  func.func @transform_4(%arg0: i32) -> (i32, i32) {
    %c0_i32 = arith.constant 0 : i32
    %c0_i32_0 = arith.constant 0 : i32
    %c0_i32_1 = arith.constant 0 : i32
    return %c0_i32, %c0_i32_0 : i32, i32
  }
  func.func @transform_5(%arg0: i32) -> (i32, i32) {
    %c0_i32 = arith.constant 0 : i32
    %c0_i32_0 = arith.constant 0 : i32
    %c0_i32_1 = arith.constant 0 : i32
    return %c0_i32, %c0_i32_0 : i32, i32
  }
  func.func @transform_6(%arg0: i32) -> (i32, i32) {
    %c0_i32 = arith.constant 0 : i32
    %c0_i32_0 = arith.constant 0 : i32
    %c0_i32_1 = arith.constant 0 : i32
    return %c0_i32, %c0_i32_0 : i32, i32
  }
  func.func @transform_7(%arg0: i32) -> (i32, i32) {
    %c0_i32 = arith.constant 0 : i32
    %c0_i32_0 = arith.constant 0 : i32
    %c0_i32_1 = arith.constant 0 : i32
    return %c0_i32, %c0_i32_0 : i32, i32
  }
  func.func @transform_8(%arg0: i32) -> (i32, i32) {
    %c0_i32 = arith.constant 0 : i32
    %c0_i32_0 = arith.constant 0 : i32
    %c0_i32_1 = arith.constant 0 : i32
    return %c0_i32, %c0_i32_0 : i32, i32
  }
  func.func @transform_9(%arg0: i32) -> (i32, i32) {
    %c0_i32 = arith.constant 0 : i32
    %c0_i32_0 = arith.constant 0 : i32
    %c0_i32_1 = arith.constant 0 : i32
    return %c0_i32, %c0_i32_0 : i32, i32
  }
  func.func @transform_10(%arg0: i32) -> (i32, i32) {
    %c0_i32 = arith.constant 0 : i32
    %c0_i32_0 = arith.constant 0 : i32
    %c0_i32_1 = arith.constant 0 : i32
    return %c0_i32, %c0_i32_0 : i32, i32
  }
  func.func @transform_11(%arg0: i32) -> (i32, i32) {
    %c0_i32 = arith.constant 0 : i32
    %c0_i32_0 = arith.constant 0 : i32
    %c0_i32_1 = arith.constant 0 : i32
    return %c0_i32, %c0_i32_0 : i32, i32
  }
  func.func @transform_12(%arg0: i32) -> (i32, i32) {
    %c0_i32 = arith.constant 0 : i32
    %c0_i32_0 = arith.constant 0 : i32
    %c0_i32_1 = arith.constant 0 : i32
    return %c0_i32, %c0_i32_0 : i32, i32
  }
  func.func @transform_13(%arg0: i32) -> (i32, i32) {
    %c0_i32 = arith.constant 0 : i32
    %c0_i32_0 = arith.constant 0 : i32
    return %arg0, %c0_i32 : i32, i32
  }
}

</mosaic_0001>

<llo_original>
// kernel: tpu_custom_call.1
$region0: #{tpu_custom_call.1}
  #allocation0 [shape = 'u32[]', space=smem, size = 0x4, offset = 0x4, fixed_abs, tag = 'smem constant byte address 0x4 - core index']
  #allocation1 [shape = 'u32[144,128]{1,0:T(1,128)}', space=vmem, size = 0x12000, scoped, tag = 'internal scratch']
  %s0 = inlined_call_operand.hbm [shape: f32[16,24], index: 0, kind: input, shape index: {}]
  %s1 = inlined_call_operand.hbm [shape: f32[16,24], index: 1, kind: input, shape index: {}]
  %s2 = inlined_call_operand.hbm [shape: f32[16,24], index: 2, kind: input, shape index: {}]
  %s3 = inlined_call_operand.vmem [shape: f32[24,128], index: 3, kind: input, shape index: {}]
  %s4 = inlined_call_operand.hbm [shape: f32[24,128], index: 4, kind: input, shape index: {}]
  %s5 = inlined_call_operand.hbm [shape: f32[24,128], index: 5, kind: input, shape index: {}]
  %s6 = inlined_call_operand.vmem [shape: f32[1,128], index: 6, kind: input, shape index: {}]
  %s7 = inlined_call_operand.vmem [shape: f32[128,128], index: 7, kind: input, shape index: {}]
  %s8 = inlined_call_operand.vmem [shape: f32[1,128], index: 8, kind: input, shape index: {}]
  %s9 = inlined_call_operand.hbm [shape: f32[128,128], index: 9, kind: input, shape index: {}]
  %s10 = inlined_call_operand.vmem [shape: f32[1,128], index: 10, kind: input, shape index: {}]
  %s11 = inlined_call_operand.vmem [shape: f32[128,8], index: 11, kind: input, shape index: {}]
  %s12 = inlined_call_operand.vmem [shape: f32[1,8], index: 12, kind: input, shape index: {}]
  %s13 = inlined_call_operand.vmem [shape: f32[16,8], index: 13, kind: output, shape index: {}]
  %s14 = sld [smem:[#allocation0]]
  $region86: #{tpu_custom_call.1} parent=0
    _
  %s16 = ssub.s32 1, %s14
  %s17 = scalar_select 0, %s16, %s14
  $region1: #{tpu_custom_call.1} parent=0
    #allocation2 [shape = 'u8[8192]{0}', space=vmem, size = 0x2000, scoped, tag = 'input window, operand 0, single buffered']
    #allocation3 [shape = 's32[1]{0}', space=sflag, size = 0x4, scoped, tag = 'scoped memory for tpu_custom_call.1']
    #allocation4 [shape = 'u8[8192]{0}', space=vmem, size = 0x2000, scoped, tag = 'input window, operand 1, single buffered']
    #allocation5 [shape = 's32[1]{0}', space=sflag, size = 0x4, scoped, tag = 'scoped memory for tpu_custom_call.1']
    #allocation6 [shape = 'u8[8192]{0}', space=vmem, size = 0x2000, scoped, tag = 'input window, operand 2, single buffered']
    #allocation7 [shape = 'u8[12288]{0}', space=vmem, size = 0x3000, scoped, tag = 'input window, operand 4, single buffered']
    #allocation8 [shape = 's32[1]{0}', space=sflag, size = 0x4, scoped, tag = 'scoped memory for tpu_custom_call.1']
    #allocation9 [shape = 'u8[12288]{0}', space=vmem, size = 0x3000, scoped, tag = 'input window, operand 5, single buffered']
    #allocation10 [shape = 'u8[65536]{0}', space=vmem, size = 0x10000, scoped, tag = 'input window, operand 9, single buffered']
    #allocation11 [shape = 's32[1]{0}', space=sflag, size = 0x4, scoped, tag = 'scoped memory for tpu_custom_call.1']
    %18 = vsyncpa [#allocation3], 0
    %19 = vsyncpa [#allocation5], 0
    %20 = vsyncpa [#allocation8], 0
    %21 = vsyncpa [#allocation11], 0
    // Predicated region
    $region2: #{tpu_custom_call.1} parent=1 // pred_check
      _
    $region3: #{tpu_custom_call.1} parent=1 // pred_check_branch
      %23 = sbr.rel (0) target = $region5
    $region4: #{tpu_custom_call.1} parent=1 // pred_region
      %s25 = ssub.s32 256, 256
      %26 = vsyncadd [#allocation3], %s25
      %s27 = sshll.u32 [#allocation2], 4
      %s28 = int_to_ptr.vmem [resolvable:$true] %s27
      %33 = dma.hbm_to_vmem [thread:$0]  %s0, 256, %s28, [#allocation3], 128, 128, 8
    $region5: #{tpu_custom_call.1} parent=1 // pred_fallthru
      _
    // Predicated region
    $region6: #{tpu_custom_call.1} parent=1 // pred_check
      _
    $region7: #{tpu_custom_call.1} parent=1 // pred_check_branch
      %35 = sbr.rel (0) target = $region9
    $region8: #{tpu_custom_call.1} parent=1 // pred_region
      %s37 = ssub.s32 256, 256
      %38 = vsyncadd [#allocation5], %s37
      %s39 = sshll.u32 [#allocation4], 4
      %s40 = int_to_ptr.vmem [resolvable:$true] %s39
      %45 = dma.hbm_to_vmem [thread:$0]  %s1, 256, %s40, [#allocation5], 128, 128, 8
    $region9: #{tpu_custom_call.1} parent=1 // pred_fallthru
      _
    // Predicated region
    $region10: #{tpu_custom_call.1} parent=1 // pred_check
      _
    $region11: #{tpu_custom_call.1} parent=1 // pred_check_branch
      %47 = sbr.rel (0) target = $region13
    $region12: #{tpu_custom_call.1} parent=1 // pred_region
      %s49 = ssub.s32 256, 256
      %50 = vsyncadd [#allocation5], %s49
      %s51 = sshll.u32 [#allocation6], 4
      %s52 = int_to_ptr.vmem [resolvable:$true] %s51
      %57 = dma.hbm_to_vmem [thread:$0]  %s2, 256, %s52, [#allocation5], 128, 128, 8
    $region13: #{tpu_custom_call.1} parent=1 // pred_fallthru
      _
    // Predicated region
    $region14: #{tpu_custom_call.1} parent=1 // pred_check
      _
    $region15: #{tpu_custom_call.1} parent=1 // pred_check_branch
      %59 = sbr.rel (0) target = $region17
    $region16: #{tpu_custom_call.1} parent=1 // pred_region
      _
    $region17: #{tpu_custom_call.1} parent=1 // pred_fallthru
      _
    // Predicated region
    $region18: #{tpu_custom_call.1} parent=1 // pred_check
      _
    $region19: #{tpu_custom_call.1} parent=1 // pred_check_branch
      %61 = sbr.rel (0) target = $region21
    $region20: #{tpu_custom_call.1} parent=1 // pred_region
      %s63 = ssub.s32 384, 384
      %64 = vsyncadd [#allocation8], %s63
      %s65 = sshll.u32 [#allocation7], 4
      %s66 = int_to_ptr.vmem [resolvable:$true] %s65
      %71 = dma.hbm_to_vmem [thread:$0]  %s4, 384, %s66, [#allocation8], 128, 128, 8
    $region21: #{tpu_custom_call.1} parent=1 // pred_fallthru
      _
    // Predicated region
    $region22: #{tpu_custom_call.1} parent=1 // pred_check
      _
    $region23: #{tpu_custom_call.1} parent=1 // pred_check_branch
      %73 = sbr.rel (0) target = $region25
    $region24: #{tpu_custom_call.1} parent=1 // pred_region
      %s75 = ssub.s32 384, 384
      %76 = vsyncadd [#allocation8], %s75
      %s77 = sshll.u32 [#allocation9], 4
      %s78 = int_to_ptr.vmem [resolvable:$true] %s77
      %83 = dma.hbm_to_vmem [thread:$0]  %s5, 384, %s78, [#allocation8], 128, 128, 8
    $region25: #{tpu_custom_call.1} parent=1 // pred_fallthru
      _
    // Predicated region
    $region26: #{tpu_custom_call.1} parent=1 // pred_check
      _
    $region27: #{tpu_custom_call.1} parent=1 // pred_check_branch
      %85 = sbr.rel (0) target = $region29
    $region28: #{tpu_custom_call.1} parent=1 // pred_region
      _
    $region29: #{tpu_custom_call.1} parent=1 // pred_fallthru
      _
    // Predicated region
    $region30: #{tpu_custom_call.1} parent=1 // pred_check
      _
    $region31: #{tpu_custom_call.1} parent=1 // pred_check_branch
      %87 = sbr.rel (0) target = $region33
    $region32: #{tpu_custom_call.1} parent=1 // pred_region
      _
    $region33: #{tpu_custom_call.1} parent=1 // pred_fallthru
      _
    // Predicated region
    $region34: #{tpu_custom_call.1} parent=1 // pred_check
      _
    $region35: #{tpu_custom_call.1} parent=1 // pred_check_branch
      %89 = sbr.rel (0) target = $region37
    $region36: #{tpu_custom_call.1} parent=1 // pred_region
      _
    $region37: #{tpu_custom_call.1} parent=1 // pred_fallthru
      _
    // Predicated region
    $region38: #{tpu_custom_call.1} parent=1 // pred_check
      _
    $region39: #{tpu_custom_call.1} parent=1 // pred_check_branch
      %91 = sbr.rel (0) target = $region41
    $region40: #{tpu_custom_call.1} parent=1 // pred_region
      %s93 = ssub.s32 2048, 2048
      %94 = vsyncadd [#allocation11], %s93
      %s95 = sshll.u32 [#allocation10], 4
      %s96 = int_to_ptr.vmem [resolvable:$true] %s95
      %101 = dma.hbm_to_vmem [thread:$0]  %s9, 2048, %s96, [#allocation11], 128, 128, 8
    $region41: #{tpu_custom_call.1} parent=1 // pred_fallthru
      _
    // Predicated region
    $region42: #{tpu_custom_call.1} parent=1 // pred_check
      _
    $region43: #{tpu_custom_call.1} parent=1 // pred_check_branch
      %103 = sbr.rel (0) target = $region45
    $region44: #{tpu_custom_call.1} parent=1 // pred_region
      _
    $region45: #{tpu_custom_call.1} parent=1 // pred_fallthru
      _
    // Predicated region
    $region46: #{tpu_custom_call.1} parent=1 // pred_check
      _
    $region47: #{tpu_custom_call.1} parent=1 // pred_check_branch
      %105 = sbr.rel (0) target = $region49
    $region48: #{tpu_custom_call.1} parent=1 // pred_region
      _
    $region49: #{tpu_custom_call.1} parent=1 // pred_fallthru
      _
    // Predicated region
    $region50: #{tpu_custom_call.1} parent=1 // pred_check
      _
    $region51: #{tpu_custom_call.1} parent=1 // pred_check_branch
      %107 = sbr.rel (0) target = $region53
    $region52: #{tpu_custom_call.1} parent=1 // pred_region
      _
    $region53: #{tpu_custom_call.1} parent=1 // pred_fallthru
      _
    // Predicated region
    $region54: #{tpu_custom_call.1} parent=1 // pred_check
      _
    $region55: #{tpu_custom_call.1} parent=1 // pred_check_branch
      %109 = sbr.rel (0) target = $region57
    $region56: #{tpu_custom_call.1} parent=1 // pred_region
      %110 = dma.done [#allocation3], 256
    $region57: #{tpu_custom_call.1} parent=1 // pred_fallthru
      _
    // Predicated region
    $region58: #{tpu_custom_call.1} parent=1 // pred_check
      _
    $region59: #{tpu_custom_call.1} parent=1 // pred_check_branch
      %112 = sbr.rel (0) target = $region61
    $region60: #{tpu_custom_call.1} parent=1 // pred_region
      %113 = dma.done [#allocation5], 256
    $region61: #{tpu_custom_call.1} parent=1 // pred_fallthru
      _
    // Predicated region
    $region62: #{tpu_custom_call.1} parent=1 // pred_check
      _
    $region63: #{tpu_custom_call.1} parent=1 // pred_check_branch
      %115 = sbr.rel (0) target = $region65
    $region64: #{tpu_custom_call.1} parent=1 // pred_region
      %116 = dma.done [#allocation5], 256
    $region65: #{tpu_custom_call.1} parent=1 // pred_fallthru
      _
    // Predicated region
    $region66: #{tpu_custom_call.1} parent=1 // pred_check
      _
    $region67: #{tpu_custom_call.1} parent=1 // pred_check_branch
      %118 = sbr.rel (0) target = $region69
    $region68: #{tpu_custom_call.1} parent=1 // pred_region
      %119 = dma.done [#allocation8], 384
    $region69: #{tpu_custom_call.1} parent=1 // pred_fallthru
      _
    // Predicated region
    $region70: #{tpu_custom_call.1} parent=1 // pred_check
      _
    $region71: #{tpu_custom_call.1} parent=1 // pred_check_branch
      %121 = sbr.rel (0) target = $region73
    $region72: #{tpu_custom_call.1} parent=1 // pred_region
      %122 = dma.done [#allocation8], 384
    $region73: #{tpu_custom_call.1} parent=1 // pred_fallthru
      _
    // Predicated region
    $region74: #{tpu_custom_call.1} parent=1 // pred_check
      _
    $region75: #{tpu_custom_call.1} parent=1 // pred_check_branch
      %124 = sbr.rel (0) target = $region77
    $region76: #{tpu_custom_call.1} parent=1 // pred_region
      %125 = dma.done [#allocation11], 2048
    $region77: #{tpu_custom_call.1} parent=1 // pred_fallthru
      _
    %v126 = vld [vmem:[#allocation2] sm:$0xff]
    %v127 = vld [vmem:[#allocation2 + $0x8] sm:$0xff]
    %v128 = vld [vmem:[#allocation4] sm:$0xff]
    %v129 = vld [vmem:[#allocation4 + $0x8] sm:$0xff]
    %v130 = vld [vmem:[#allocation6] sm:$0xff]
    %v131 = vld [vmem:[#allocation6 + $0x8] sm:$0xff]
    %v132 = vld [vmem:[%s3] sm:$0xff]
    %v133 = vld [vmem:[%s3 + $0x8] sm:$0xff]
    %v134 = vld [vmem:[%s3 + $0x10] sm:$0xff]
    %v135 = vld [vmem:[#allocation7] sm:$0xff]
    %v136 = vld [vmem:[#allocation7 + $0x8] sm:$0xff]
    %v137 = vld [vmem:[#allocation7 + $0x10] sm:$0xff]
    %vm138 = vcmask 195584
    %v140 = vsel %vm138, %v128, 0
    %v143 = vsel %vm138, %v129, 0
    %145 = vmatprep.subr.mxu0 0.0
    %146 = vmatpush1.msra.mxu0 %v135
    %147 = vmatprep.subr.mxu0 0.0
    %148 = vmatpush1.msra.mxu0 %v136
    %149 = vmatprep.subr.mxu0 0.0
    %150 = vmatpush1.msra.mxu0 %v137
    %151 = vmatprep.subr.mxu0 0.0
    %152 = vmatpush1.msra.mxu0 0.0
    %153 = vmatprep.subr.mxu0 0.0
    %154 = vmatpush1.msra.mxu0 0.0
    %155 = vmatprep.subr.mxu0 0.0
    %156 = vmatpush1.msra.mxu0 0.0
    %157 = vmatprep.subr.mxu0 0.0
    %158 = vmatpush1.msra.mxu0 0.0
    %159 = vmatprep.subr.mxu0 0.0
    %160 = vmatpush1.msra.mxu0 0.0
    %161 = vmatprep.subr.mxu0 0.0
    %162 = vmatpush1.msra.mxu0 0.0
    %163 = vmatprep.subr.mxu0 0.0
    %164 = vmatpush1.msra.mxu0 0.0
    %165 = vmatprep.subr.mxu0 0.0
    %166 = vmatpush1.msra.mxu0 0.0
    %167 = vmatprep.subr.mxu0 0.0
    %168 = vmatpush1.msra.mxu0 0.0
    %169 = vmatprep.subr.mxu0 0.0
    %170 = vmatpush1.msra.mxu0 0.0
    %171 = vmatprep.subr.mxu0 0.0
    %172 = vmatpush1.msra.mxu0 0.0
    %173 = vmatprep.subr.mxu0 0.0
    %174 = vmatpush1.msra.mxu0 0.0
    %175 = vmatprep.subr.mxu0 0.0
    %176 = vmatpush1.msra.mxu0 0.0
    %177 = vmatprep.subr.mxu0 0.0
    %178 = vmatpush1.msra.mxu0 0.0
    %179 = vmatprep.subr.mxu0 0.0
    %180 = vmatpush1.msra.mxu0 0.0
    %181 = vmatprep.subr.mxu0 0.0
    %182 = vmatpush1.msra.mxu0 0.0
    %183 = vmatprep.subr.mxu0 0.0
    %184 = vmatpush1.msra.mxu0 0.0
    %185 = vmatprep.subr.mxu0 0.0
    %186 = vmatpush1.msra.mxu0 0.0
    %187 = vmatprep.subr.mxu0 0.0
    %188 = vmatpush1.msra.mxu0 0.0
    %189 = vmatprep.subr.mxu0 0.0
    %190 = vmatpush1.msra.mxu0 0.0
    %191 = vmatprep.subr.mxu0 0.0
    %192 = vmatpush1.msra.mxu0 0.0
    %193 = vmatprep.subr.mxu0 0.0
    %194 = vmatpush1.msra.mxu0 0.0
    %195 = vmatprep.subr.mxu0 0.0
    %196 = vmatpush1.msra.mxu0 0.0
    %197 = vmatprep.subr.mxu0 0.0
    %198 = vmatpush1.msra.mxu0 0.0
    %199 = vmatprep.subr.mxu0 0.0
    %200 = vmatpush1.msra.mxu0 0.0
    %201 = vmatprep.subr.mxu0 0.0
    %202 = vmatpush1.msra.mxu0 0.0
    %203 = vmatprep.subr.mxu0 0.0
    %204 = vmatpush1.msra.mxu0 0.0
    %205 = vmatprep.subr.mxu0 0.0
    %206 = vmatpush1.msra.mxu0 0.0
    %207 = vmatprep.subr.mxu0 0.0
    %208 = vmatpush1.msra.mxu0 0.0
    %209 = vmatprep.mubr.f32.mxu0 0.0
    %210 = vmatmul.mubr.f32.gmra.mrb[0].mxu0 %v140
    %v211 = vpop.f32.mrb[0].mxu0
    %v212 = vadd.f32 0.0, %v211
    %v213 = vpop.f32.mrb[0].mxu0
    %214 = vmatprep.mubr.f32.mxu0 0.0
    %215 = vmatmul.mubr.f32.gmra.mrb[0].mxu0 %v143
    %v216 = vpop.f32.mrb[0].mxu0
    %v217 = vadd.f32 0.0, %v216
    %v218 = vpop.f32.mrb[0].mxu0
    %219 = vdwg.mxu0
    %v221 = vsel %vm138, %v126, 0
    %v224 = vsel %vm138, %v127, 0
    %226 = vmatprep.subr.mxu0 0.0
    %227 = vmatpush1.msra.mxu0 %v132
    %228 = vmatprep.subr.mxu0 0.0
    %229 = vmatpush1.msra.mxu0 %v133
    %230 = vmatprep.subr.mxu0 0.0
    %231 = vmatpush1.msra.mxu0 %v134
    %232 = vmatprep.subr.mxu0 0.0
    %233 = vmatpush1.msra.mxu0 0.0
    %234 = vmatprep.subr.mxu0 0.0
    %235 = vmatpush1.msra.mxu0 0.0
    %236 = vmatprep.subr.mxu0 0.0
    %237 = vmatpush1.msra.mxu0 0.0
    %238 = vmatprep.subr.mxu0 0.0
    %239 = vmatpush1.msra.mxu0 0.0
    %240 = vmatprep.subr.mxu0 0.0
    %241 = vmatpush1.msra.mxu0 0.0
    %242 = vmatprep.subr.mxu0 0.0
    %243 = vmatpush1.msra.mxu0 0.0
    %244 = vmatprep.subr.mxu0 0.0
    %245 = vmatpush1.msra.mxu0 0.0
    %246 = vmatprep.subr.mxu0 0.0
    %247 = vmatpush1.msra.mxu0 0.0
    %248 = vmatprep.subr.mxu0 0.0
    %249 = vmatpush1.msra.mxu0 0.0
    %250 = vmatprep.subr.mxu0 0.0
    %251 = vmatpush1.msra.mxu0 0.0
    %252 = vmatprep.subr.mxu0 0.0
    %253 = vmatpush1.msra.mxu0 0.0
    %254 = vmatprep.subr.mxu0 0.0
    %255 = vmatpush1.msra.mxu0 0.0
    %256 = vmatprep.subr.mxu0 0.0
    %257 = vmatpush1.msra.mxu0 0.0
    %258 = vmatprep.subr.mxu0 0.0
    %259 = vmatpush1.msra.mxu0 0.0
    %260 = vmatprep.subr.mxu0 0.0
    %261 = vmatpush1.msra.mxu0 0.0
    %262 = vmatprep.subr.mxu0 0.0
    %263 = vmatpush1.msra.mxu0 0.0
    %264 = vmatprep.subr.mxu0 0.0
    %265 = vmatpush1.msra.mxu0 0.0
    %266 = vmatprep.subr.mxu0 0.0
    %267 = vmatpush1.msra.mxu0 0.0
    %268 = vmatprep.subr.mxu0 0.0
    %269 = vmatpush1.msra.mxu0 0.0
    %270 = vmatprep.subr.mxu0 0.0
    %271 = vmatpush1.msra.mxu0 0.0
    %272 = vmatprep.subr.mxu0 0.0
    %273 = vmatpush1.msra.mxu0 0.0
    %274 = vmatprep.subr.mxu0 0.0
    %275 = vmatpush1.msra.mxu0 0.0
    %276 = vmatprep.subr.mxu0 0.0
    %277 = vmatpush1.msra.mxu0 0.0
    %278 = vmatprep.subr.mxu0 0.0
    %279 = vmatpush1.msra.mxu0 0.0
    %280 = vmatprep.subr.mxu0 0.0
    %281 = vmatpush1.msra.mxu0 0.0
    %282 = vmatprep.subr.mxu0 0.0
    %283 = vmatpush1.msra.mxu0 0.0
    %284 = vmatprep.subr.mxu0 0.0
    %285 = vmatpush1.msra.mxu0 0.0
    %286 = vmatprep.subr.mxu0 0.0
    %287 = vmatpush1.msra.mxu0 0.0
    %288 = vmatprep.subr.mxu0 0.0
    %289 = vmatpush1.msra.mxu0 0.0
    %290 = vmatprep.mubr.f32.mxu0 0.0
    %291 = vmatmul.mubr.f32.gmra.mrb[0].mxu0 %v221
    %v292 = vpop.f32.mrb[0].mxu0
    %v293 = vadd.f32 %v212, %v292
    %v294 = vpop.f32.mrb[0].mxu0
    %295 = vmatprep.mubr.f32.mxu0 0.0
    %296 = vmatmul.mubr.f32.gmra.mrb[0].mxu0 %v224
    %v297 = vpop.f32.mrb[0].mxu0
    %v298 = vadd.f32 %v217, %v297
    %v299 = vpop.f32.mrb[0].mxu0
    %300 = vdwg.mxu0
    %v301 = vld [vmem:[#allocation9] sm:$0xff]
    %v302 = vld [vmem:[#allocation9 + $0x8] sm:$0xff]
    %v303 = vld [vmem:[#allocation9 + $0x10] sm:$0xff]
    %v305 = vsel %vm138, %v130, 0
    %v308 = vsel %vm138, %v131, 0
    %310 = vmatprep.subr.mxu0 0.0
    %311 = vmatpush1.msra.mxu0 %v301
    %312 = vmatprep.subr.mxu0 0.0
    %313 = vmatpush1.msra.mxu0 %v302
    %314 = vmatprep.subr.mxu0 0.0
    %315 = vmatpush1.msra.mxu0 %v303
    %316 = vmatprep.subr.mxu0 0.0
    %317 = vmatpush1.msra.mxu0 0.0
    %318 = vmatprep.subr.mxu0 0.0
    %319 = vmatpush1.msra.mxu0 0.0
    %320 = vmatprep.subr.mxu0 0.0
    %321 = vmatpush1.msra.mxu0 0.0
    %322 = vmatprep.subr.mxu0 0.0
    %323 = vmatpush1.msra.mxu0 0.0
    %324 = vmatprep.subr.mxu0 0.0
    %325 = vmatpush1.msra.mxu0 0.0
    %326 = vmatprep.subr.mxu0 0.0
    %327 = vmatpush1.msra.mxu0 0.0
    %328 = vmatprep.subr.mxu0 0.0
    %329 = vmatpush1.msra.mxu0 0.0
    %330 = vmatprep.subr.mxu0 0.0
    %331 = vmatpush1.msra.mxu0 0.0
    %332 = vmatprep.subr.mxu0 0.0
    %333 = vmatpush1.msra.mxu0 0.0
    %334 = vmatprep.subr.mxu0 0.0
    %335 = vmatpush1.msra.mxu0 0.0
    %336 = vmatprep.subr.mxu0 0.0
    %337 = vmatpush1.msra.mxu0 0.0
    %338 = vmatprep.subr.mxu0 0.0
    %339 = vmatpush1.msra.mxu0 0.0
    %340 = vmatprep.subr.mxu0 0.0
    %341 = vmatpush1.msra.mxu0 0.0
    %342 = vmatprep.subr.mxu0 0.0
    %343 = vmatpush1.msra.mxu0 0.0
    %344 = vmatprep.subr.mxu0 0.0
    %345 = vmatpush1.msra.mxu0 0.0
    %346 = vmatprep.subr.mxu0 0.0
    %347 = vmatpush1.msra.mxu0 0.0
    %348 = vmatprep.subr.mxu0 0.0
    %349 = vmatpush1.msra.mxu0 0.0
    %350 = vmatprep.subr.mxu0 0.0
    %351 = vmatpush1.msra.mxu0 0.0
    %352 = vmatprep.subr.mxu0 0.0
    %353 = vmatpush1.msra.mxu0 0.0
    %354 = vmatprep.subr.mxu0 0.0
    %355 = vmatpush1.msra.mxu0 0.0
    %356 = vmatprep.subr.mxu0 0.0
    %357 = vmatpush1.msra.mxu0 0.0
    %358 = vmatprep.subr.mxu0 0.0
    %359 = vmatpush1.msra.mxu0 0.0
    %360 = vmatprep.subr.mxu0 0.0
    %361 = vmatpush1.msra.mxu0 0.0
    %362 = vmatprep.subr.mxu0 0.0
    %363 = vmatpush1.msra.mxu0 0.0
    %364 = vmatprep.subr.mxu0 0.0
    %365 = vmatpush1.msra.mxu0 0.0
    %366 = vmatprep.subr.mxu0 0.0
    %367 = vmatpush1.msra.mxu0 0.0
    %368 = vmatprep.subr.mxu0 0.0
    %369 = vmatpush1.msra.mxu0 0.0
    %370 = vmatprep.subr.mxu0 0.0
    %371 = vmatpush1.msra.mxu0 0.0
    %372 = vmatprep.subr.mxu0 0.0
    %373 = vmatpush1.msra.mxu0 0.0
    %374 = vmatprep.mubr.f32.mxu0 0.0
    %375 = vmatmul.mubr.f32.gmra.mrb[0].mxu0 %v305
    %v376 = vpop.f32.mrb[0].mxu0
    %v377 = vadd.f32 0.0, %v376
    %v378 = vpop.f32.mrb[0].mxu0
    %379 = vmatprep.mubr.f32.mxu0 0.0
    %380 = vmatmul.mubr.f32.gmra.mrb[0].mxu0 %v308
    %v381 = vpop.f32.mrb[0].mxu0
    %v382 = vadd.f32 0.0, %v381
    %v383 = vpop.f32.mrb[0].mxu0
    %384 = vdwg.mxu0
    %v385 = vadd.f32 %v293, %v377
    %v386 = vadd.f32 %v298, %v382
    %v387 = vld [vmem:[%s6] sm:$0x1]
    %v389 = vlaneseq
    %v390 = vshrl.u32 %v389, 7
    %v391 = vsub.s32 0, %v390
    %v392 = vrot.slane %v387, %v391
    %v394 = vadd.f32 %v385, %v392
    %v395 = vadd.f32 %v386, %v392
    %v396 = vmax.f32 %v394, 0.0
    %v397 = vmax.f32 %v395, 0.0
    %v398 = vld [vmem:[%s7] sm:$0xff]
    %v399 = vld [vmem:[%s7 + $0x8] sm:$0xff]
    %v400 = vld [vmem:[%s7 + $0x10] sm:$0xff]
    %v401 = vld [vmem:[%s7 + $0x18] sm:$0xff]
    %v402 = vld [vmem:[%s7 + $0x20] sm:$0xff]
    %v403 = vld [vmem:[%s7 + $0x28] sm:$0xff]
    %v404 = vld [vmem:[%s7 + $0x30] sm:$0xff]
    %v405 = vld [vmem:[%s7 + $0x38] sm:$0xff]
    %v406 = vld [vmem:[%s7 + $0x40] sm:$0xff]
    %v407 = vld [vmem:[%s7 + $0x48] sm:$0xff]
    %v408 = vld [vmem:[%s7 + $0x50] sm:$0xff]
    %v409 = vld [vmem:[%s7 + $0x58] sm:$0xff]
    %v410 = vld [vmem:[%s7 + $0x60] sm:$0xff]
    %v411 = vld [vmem:[%s7 + $0x68] sm:$0xff]
    %v412 = vld [vmem:[%s7 + $0x70] sm:$0xff]
    %v413 = vld [vmem:[%s7 + $0x78] sm:$0xff]
    %v414 = vld [vmem:[%s8] sm:$0x1]
    %v416 = vlaneseq
    %v417 = vshrl.u32 %v416, 7
    %v418 = vsub.s32 0, %v417
    %v419 = vrot.slane %v414, %v418
    %421 = vmatprep.subr.mxu0 0.0
    %422 = vmatpush1.msra.mxu0 %v398
    %423 = vmatprep.subr.mxu0 0.0
    %424 = vmatpush1.msra.mxu0 %v399
    %425 = vmatprep.subr.mxu0 0.0
    %426 = vmatpush1.msra.mxu0 %v400
    %427 = vmatprep.subr.mxu0 0.0
    %428 = vmatpush1.msra.mxu0 %v401
    %429 = vmatprep.subr.mxu0 0.0
    %430 = vmatpush1.msra.mxu0 %v402
    %431 = vmatprep.subr.mxu0 0.0
    %432 = vmatpush1.msra.mxu0 %v403
    %433 = vmatprep.subr.mxu0 0.0
    %434 = vmatpush1.msra.mxu0 %v404
    %435 = vmatprep.subr.mxu0 0.0
    %436 = vmatpush1.msra.mxu0 %v405
    %437 = vmatprep.subr.mxu0 0.0
    %438 = vmatpush1.msra.mxu0 %v406
    %439 = vmatprep.subr.mxu0 0.0
    %440 = vmatpush1.msra.mxu0 %v407
    %441 = vmatprep.subr.mxu0 0.0
    %442 = vmatpush1.msra.mxu0 %v408
    %443 = vmatprep.subr.mxu0 0.0
    %444 = vmatpush1.msra.mxu0 %v409
    %445 = vmatprep.subr.mxu0 0.0
    %446 = vmatpush1.msra.mxu0 %v410
    %447 = vmatprep.subr.mxu0 0.0
    %448 = vmatpush1.msra.mxu0 %v411
    %449 = vmatprep.subr.mxu0 0.0
    %450 = vmatpush1.msra.mxu0 %v412
    %451 = vmatprep.subr.mxu0 0.0
    %452 = vmatpush1.msra.mxu0 %v413
    %453 = vmatprep.subr.mxu0 0.0
    %454 = vmatpush1.msra.mxu0 0.0
    %455 = vmatprep.subr.mxu0 0.0
    %456 = vmatpush1.msra.mxu0 0.0
    %457 = vmatprep.subr.mxu0 0.0
    %458 = vmatpush1.msra.mxu0 0.0
    %459 = vmatprep.subr.mxu0 0.0
    %460 = vmatpush1.msra.mxu0 0.0
    %461 = vmatprep.subr.mxu0 0.0
    %462 = vmatpush1.msra.mxu0 0.0
    %463 = vmatprep.subr.mxu0 0.0
    %464 = vmatpush1.msra.mxu0 0.0
    %465 = vmatprep.subr.mxu0 0.0
    %466 = vmatpush1.msra.mxu0 0.0
    %467 = vmatprep.subr.mxu0 0.0
    %468 = vmatpush1.msra.mxu0 0.0
    %469 = vmatprep.subr.mxu0 0.0
    %470 = vmatpush1.msra.mxu0 0.0
    %471 = vmatprep.subr.mxu0 0.0
    %472 = vmatpush1.msra.mxu0 0.0
    %473 = vmatprep.subr.mxu0 0.0
    %474 = vmatpush1.msra.mxu0 0.0
    %475 = vmatprep.subr.mxu0 0.0
    %476 = vmatpush1.msra.mxu0 0.0
    %477 = vmatprep.subr.mxu0 0.0
    %478 = vmatpush1.msra.mxu0 0.0
    %479 = vmatprep.subr.mxu0 0.0
    %480 = vmatpush1.msra.mxu0 0.0
    %481 = vmatprep.subr.mxu0 0.0
    %482 = vmatpush1.msra.mxu0 0.0
    %483 = vmatprep.subr.mxu0 0.0
    %484 = vmatpush1.msra.mxu0 0.0
    %485 = vmatprep.mubr.f32.mxu0 0.0
    %486 = vmatmul.mubr.f32.gmra.mrb[0].mxu0 %v396
    %v487 = vpop.f32.mrb[0].mxu0
    %v488 = vadd.f32 %v419, %v487
    %v489 = vpop.f32.mrb[0].mxu0
    %490 = vmatprep.mubr.f32.mxu0 0.0
    %491 = vmatmul.mubr.f32.gmra.mrb[0].mxu0 %v397
    %v492 = vpop.f32.mrb[0].mxu0
    %v493 = vadd.f32 %v419, %v492
    %v494 = vpop.f32.mrb[0].mxu0
    %495 = vdwg.mxu0
    %v496 = vmax.f32 %v488, 0.0
    %v497 = vmax.f32 %v493, 0.0
    %v498 = vld [vmem:[#allocation10] sm:$0xff]
    %v499 = vld [vmem:[#allocation10 + $0x8] sm:$0xff]
    %v500 = vld [vmem:[#allocation10 + $0x10] sm:$0xff]
    %v501 = vld [vmem:[#allocation10 + $0x18] sm:$0xff]
    %v502 = vld [vmem:[#allocation10 + $0x20] sm:$0xff]
    %v503 = vld [vmem:[#allocation10 + $0x28] sm:$0xff]
    %v504 = vld [vmem:[#allocation10 + $0x30] sm:$0xff]
    %v505 = vld [vmem:[#allocation10 + $0x38] sm:$0xff]
    %v506 = vld [vmem:[#allocation10 + $0x40] sm:$0xff]
    %v507 = vld [vmem:[#allocation10 + $0x48] sm:$0xff]
    %v508 = vld [vmem:[#allocation10 + $0x50] sm:$0xff]
    %v509 = vld [vmem:[#allocation10 + $0x58] sm:$0xff]
    %v510 = vld [vmem:[#allocation10 + $0x60] sm:$0xff]
    %v511 = vld [vmem:[#allocation10 + $0x68] sm:$0xff]
    %v512 = vld [vmem:[#allocation10 + $0x70] sm:$0xff]
    %v513 = vld [vmem:[#allocation10 + $0x78] sm:$0xff]
    %v514 = vld [vmem:[%s10] sm:$0x1]
    %v516 = vlaneseq
    %v517 = vshrl.u32 %v516, 7
    %v518 = vsub.s32 0, %v517
    %v519 = vrot.slane %v514, %v518
    %521 = vmatprep.subr.mxu0 0.0
    %522 = vmatpush1.msra.mxu0 %v498
    %523 = vmatprep.subr.mxu0 0.0
    %524 = vmatpush1.msra.mxu0 %v499
    %525 = vmatprep.subr.mxu0 0.0
    %526 = vmatpush1.msra.mxu0 %v500
    %527 = vmatprep.subr.mxu0 0.0
    %528 = vmatpush1.msra.mxu0 %v501
    %529 = vmatprep.subr.mxu0 0.0
    %530 = vmatpush1.msra.mxu0 %v502
    %531 = vmatprep.subr.mxu0 0.0
    %532 = vmatpush1.msra.mxu0 %v503
    %533 = vmatprep.subr.mxu0 0.0
    %534 = vmatpush1.msra.mxu0 %v504
    %535 = vmatprep.subr.mxu0 0.0
    %536 = vmatpush1.msra.mxu0 %v505
    %537 = vmatprep.subr.mxu0 0.0
    %538 = vmatpush1.msra.mxu0 %v506
    %539 = vmatprep.subr.mxu0 0.0
    %540 = vmatpush1.msra.mxu0 %v507
    %541 = vmatprep.subr.mxu0 0.0
    %542 = vmatpush1.msra.mxu0 %v508
    %543 = vmatprep.subr.mxu0 0.0
    %544 = vmatpush1.msra.mxu0 %v509
    %545 = vmatprep.subr.mxu0 0.0
    %546 = vmatpush1.msra.mxu0 %v510
    %547 = vmatprep.subr.mxu0 0.0
    %548 = vmatpush1.msra.mxu0 %v511
    %549 = vmatprep.subr.mxu0 0.0
    %550 = vmatpush1.msra.mxu0 %v512
    %551 = vmatprep.subr.mxu0 0.0
    %552 = vmatpush1.msra.mxu0 %v513
    %553 = vmatprep.subr.mxu0 0.0
    %554 = vmatpush1.msra.mxu0 0.0
    %555 = vmatprep.subr.mxu0 0.0
    %556 = vmatpush1.msra.mxu0 0.0
    %557 = vmatprep.subr.mxu0 0.0
    %558 = vmatpush1.msra.mxu0 0.0
    %559 = vmatprep.subr.mxu0 0.0
    %560 = vmatpush1.msra.mxu0 0.0
    %561 = vmatprep.subr.mxu0 0.0
    %562 = vmatpush1.msra.mxu0 0.0
    %563 = vmatprep.subr.mxu0 0.0
    %564 = vmatpush1.msra.mxu0 0.0
    %565 = vmatprep.subr.mxu0 0.0
    %566 = vmatpush1.msra.mxu0 0.0
    %567 = vmatprep.subr.mxu0 0.0
    %568 = vmatpush1.msra.mxu0 0.0
    %569 = vmatprep.subr.mxu0 0.0
    %570 = vmatpush1.msra.mxu0 0.0
    %571 = vmatprep.subr.mxu0 0.0
    %572 = vmatpush1.msra.mxu0 0.0
    %573 = vmatprep.subr.mxu0 0.0
    %574 = vmatpush1.msra.mxu0 0.0
    %575 = vmatprep.subr.mxu0 0.0
    %576 = vmatpush1.msra.mxu0 0.0
    %577 = vmatprep.subr.mxu0 0.0
    %578 = vmatpush1.msra.mxu0 0.0
    %579 = vmatprep.subr.mxu0 0.0
    %580 = vmatpush1.msra.mxu0 0.0
    %581 = vmatprep.subr.mxu0 0.0
    %582 = vmatpush1.msra.mxu0 0.0
    %583 = vmatprep.subr.mxu0 0.0
    %584 = vmatpush1.msra.mxu0 0.0
    %585 = vmatprep.mubr.f32.mxu0 0.0
    %586 = vmatmul.mubr.f32.gmra.mrb[0].mxu0 %v496
    %v587 = vpop.f32.mrb[0].mxu0
    %v588 = vadd.f32 %v519, %v587
    %v589 = vpop.f32.mrb[0].mxu0
    %590 = vmatprep.mubr.f32.mxu0 0.0
    %591 = vmatmul.mubr.f32.gmra.mrb[0].mxu0 %v497
    %v592 = vpop.f32.mrb[0].mxu0
    %v593 = vadd.f32 %v519, %v592
    %v594 = vpop.f32.mrb[0].mxu0
    %595 = vdwg.mxu0
    %v596 = vmax.f32 %v588, 0.0
    %v597 = vmax.f32 %v593, 0.0
    %v598 = vld [vmem:[%s11] sm:$0xff]
    %v599 = vld [vmem:[%s11 + $0x8] sm:$0xff]
    %v600 = vld [vmem:[%s11 + $0x10] sm:$0xff]
    %v601 = vld [vmem:[%s11 + $0x18] sm:$0xff]
    %v602 = vld [vmem:[%s11 + $0x20] sm:$0xff]
    %v603 = vld [vmem:[%s11 + $0x28] sm:$0xff]
    %v604 = vld [vmem:[%s11 + $0x30] sm:$0xff]
    %v605 = vld [vmem:[%s11 + $0x38] sm:$0xff]
    %v606 = vld [vmem:[%s11 + $0x40] sm:$0xff]
    %v607 = vld [vmem:[%s11 + $0x48] sm:$0xff]
    %v608 = vld [vmem:[%s11 + $0x50] sm:$0xff]
    %v609 = vld [vmem:[%s11 + $0x58] sm:$0xff]
    %v610 = vld [vmem:[%s11 + $0x60] sm:$0xff]
    %v611 = vld [vmem:[%s11 + $0x68] sm:$0xff]
    %v612 = vld [vmem:[%s11 + $0x70] sm:$0xff]
    %v613 = vld [vmem:[%s11 + $0x78] sm:$0xff]
    %v614 = vld [vmem:[%s12] sm:$0x1]
    %v616 = vlaneseq
    %v617 = vshrl.u32 %v616, 7
    %v618 = vsub.s32 0, %v617
    %v619 = vrot.slane %v614, %v618
    %621 = vmatprep.subr.mxu0 0.0
    %622 = vmatpush1.msra.mxu0 %v598
    %623 = vmatprep.subr.mxu0 0.0
    %624 = vmatpush1.msra.mxu0 %v599
    %625 = vmatprep.subr.mxu0 0.0
    %626 = vmatpush1.msra.mxu0 %v600
    %627 = vmatprep.subr.mxu0 0.0
    %628 = vmatpush1.msra.mxu0 %v601
    %629 = vmatprep.subr.mxu0 0.0
    %630 = vmatpush1.msra.mxu0 %v602
    %631 = vmatprep.subr.mxu0 0.0
    %632 = vmatpush1.msra.mxu0 %v603
    %633 = vmatprep.subr.mxu0 0.0
    %634 = vmatpush1.msra.mxu0 %v604
    %635 = vmatprep.subr.mxu0 0.0
    %636 = vmatpush1.msra.mxu0 %v605
    %637 = vmatprep.subr.mxu0 0.0
    %638 = vmatpush1.msra.mxu0 %v606
    %639 = vmatprep.subr.mxu0 0.0
    %640 = vmatpush1.msra.mxu0 %v607
    %641 = vmatprep.subr.mxu0 0.0
    %642 = vmatpush1.msra.mxu0 %v608
    %643 = vmatprep.subr.mxu0 0.0
    %644 = vmatpush1.msra.mxu0 %v609
    %645 = vmatprep.subr.mxu0 0.0
    %646 = vmatpush1.msra.mxu0 %v610
    %647 = vmatprep.subr.mxu0 0.0
    %648 = vmatpush1.msra.mxu0 %v611
    %649 = vmatprep.subr.mxu0 0.0
    %650 = vmatpush1.msra.mxu0 %v612
    %651 = vmatprep.subr.mxu0 0.0
    %652 = vmatpush1.msra.mxu0 %v613
    %653 = vmatprep.subr.mxu0 0.0
    %654 = vmatpush1.msra.mxu0 0.0
    %655 = vmatprep.subr.mxu0 0.0
    %656 = vmatpush1.msra.mxu0 0.0
    %657 = vmatprep.subr.mxu0 0.0
    %658 = vmatpush1.msra.mxu0 0.0
    %659 = vmatprep.subr.mxu0 0.0
    %660 = vmatpush1.msra.mxu0 0.0
    %661 = vmatprep.subr.mxu0 0.0
    %662 = vmatpush1.msra.mxu0 0.0
    %663 = vmatprep.subr.mxu0 0.0
    %664 = vmatpush1.msra.mxu0 0.0
    %665 = vmatprep.subr.mxu0 0.0
    %666 = vmatpush1.msra.mxu0 0.0
    %667 = vmatprep.subr.mxu0 0.0
    %668 = vmatpush1.msra.mxu0 0.0
    %669 = vmatprep.subr.mxu0 0.0
    %670 = vmatpush1.msra.mxu0 0.0
    %671 = vmatprep.subr.mxu0 0.0
    %672 = vmatpush1.msra.mxu0 0.0
    %673 = vmatprep.subr.mxu0 0.0
    %674 = vmatpush1.msra.mxu0 0.0
    %675 = vmatprep.subr.mxu0 0.0
    %676 = vmatpush1.msra.mxu0 0.0
    %677 = vmatprep.subr.mxu0 0.0
    %678 = vmatpush1.msra.mxu0 0.0
    %679 = vmatprep.subr.mxu0 0.0
    %680 = vmatpush1.msra.mxu0 0.0
    %681 = vmatprep.subr.mxu0 0.0
    %682 = vmatpush1.msra.mxu0 0.0
    %683 = vmatprep.subr.mxu0 0.0
    %684 = vmatpush1.msra.mxu0 0.0
    %685 = vmatprep.mubr.f32.mxu0 0.0
    %686 = vmatmul.mubr.f32.gmra.mrb[0].mxu0 %v596
    %v687 = vpop.f32.mrb[0].mxu0
    %v688 = vadd.f32 %v619, %v687
    %v689 = vpop.f32.mrb[0].mxu0
    %690 = vmatprep.mubr.f32.mxu0 0.0
    %691 = vmatmul.mubr.f32.gmra.mrb[0].mxu0 %v597
    %v692 = vpop.f32.mrb[0].mxu0
    %v693 = vadd.f32 %v619, %v692
    %v694 = vpop.f32.mrb[0].mxu0
    %695 = vdwg.mxu0
    %vm696 = vcmask 64512
    %697 = vst.msk [vmem:[%s13] sm:$0xff] %vm696, %v688
    %698 = vst.msk [vmem:[%s13 + $0x8] sm:$0xff] %vm696, %v693
    // Predicated region
    $region78: #{tpu_custom_call.1} parent=1 // pred_check
      _
    $region79: #{tpu_custom_call.1} parent=1 // pred_check_branch
      %700 = sbr.rel (0) target = $region81
    $region80: #{tpu_custom_call.1} parent=1 // pred_region
      _
    $region81: #{tpu_custom_call.1} parent=1 // pred_fallthru
      _
    // Predicated region
    $region82: #{tpu_custom_call.1} parent=1 // pred_check
      _
    $region83: #{tpu_custom_call.1} parent=1 // pred_check_branch
      %702 = sbr.rel (0) target = $region85
    $region84: #{tpu_custom_call.1} parent=1 // pred_region
      _
    $region85: #{tpu_custom_call.1} parent=1 // pred_fallthru
      _
    %703 = vsyncpa [#allocation3], 1
    %704 = vsyncpa [#allocation5], 1
    %705 = vsyncpa [#allocation8], 1
    %706 = vsyncpa [#allocation11], 1

</llo_original>
